<compile_context>
chip_gen: v6e
topology: v6e:2x2x1
jax: 0.10.0
libtpu: 0.0.40
codegen_flags: <defaults>
</compile_context>

<pallas_src>
import jax
import jax.numpy as jnp
from jax.experimental import pallas as pl
from jax.experimental.pallas import tpu as pltpu

INPUT_DIM = 23
HIDDEN_DIM = 64
OUTPUT_DIM = 2
N_HIDDEN_LAYERS = 2

LANE = 128            # TPU lane width; padded feature width inside the kernel
STRIPE = 128          # rows per layer inside the concatenated weight slab (tile aligned)
NEG_BIG = -1.0e30     # "minus infinity" bias for padded logit lanes (f32 -> exp() == 0)
OUT_PAD = 8           # narrow output width for the bandwidth-bound (large-B) regime
LANE_DENSE_MAX_B = 256   # <= this padded batch: keep lane-dense (B,128) output
MAX_TILE_B = 512
SPLIT_MIN_B = 256     # batches above this are split into an even number of grid steps


def mlp_kernel(x_ref, w_ref, b_ref, o_ref):
    cdt = w_ref.dtype
    x = x_ref[...]

    # Static, stripe-aligned views into the concatenated weight / bias slabs.
    w1 = w_ref[0:INPUT_DIM, :]
    w2 = w_ref[STRIPE:2 * STRIPE, :]
    w3 = w_ref[2 * STRIPE:3 * STRIPE, :]
    wo = w_ref[3 * STRIPE:4 * STRIPE, :]
    b1 = b_ref[0:1, :]
    b2 = b_ref[1:2, :]
    b3 = b_ref[2:3, :]
    bo = b_ref[3:4, :]

    # input layer + ReLU   (padded lanes: 0*w + 0 bias -> relu(0) = 0)
    h = jnp.dot(x, w1, preferred_element_type=jnp.float32) + b1
    h = jnp.maximum(h, 0.0).astype(cdt)
    # hidden layer 1 + ReLU
    h = jnp.dot(h, w2, preferred_element_type=jnp.float32) + b2
    h = jnp.maximum(h, 0.0).astype(cdt)
    # hidden layer 2 + ReLU
    h = jnp.dot(h, w3, preferred_element_type=jnp.float32) + b3
    h = jnp.maximum(h, 0.0).astype(cdt)
    # output layer: padded lanes get a NEG_BIG f32 bias -> exp() == 0 below.
    logits = jnp.dot(h, wo, preferred_element_type=jnp.float32) + bo

    # Numerically-stable softmax over the 128-lane block; padded lanes contribute exactly
    # 0 to the denominator and carry exact-0 probabilities.
    m = jnp.max(logits, axis=-1, keepdims=True)
    e = jnp.exp(logits - m)
    denom = jnp.sum(e, axis=-1, keepdims=True)
    probs = e * pl.reciprocal(denom, approx=False)

    out_w = o_ref.shape[-1]          # 8 (narrow) or 128 (lane-dense), chosen by wrapper
    o_ref[...] = probs[:, :out_w].astype(o_ref.dtype)


def _round_up(n, m):
    return ((n + m - 1) // m) * m


def _choose_tiling(B):
    """Return (tile_b, B_padded). Tiles are 16-row aligned (f32 & bf16 sublane friendly).

    Small batches: one step (latency regime, ~0.35us/step overhead not worth it).
    Larger batches: tiles <= MAX_TILE_B and an EVEN number of >=2 grid steps so the
    pipeline overlaps x/out DMAs with compute and v7x's two TensorCores split the
    "parallel" batch axis evenly.  Ragged batches are padded up to a tile multiple.
    """
    if B <= SPLIT_MIN_B:
        tile = _round_up(max(B, 1), 16)
        return tile, tile
    tile = min(MAX_TILE_B, _round_up(pl.cdiv(B, 2), 16))
    n_steps = pl.cdiv(B, tile)
    if n_steps % 2:
        n_steps += 1
    return tile, n_steps * tile


def prepare_params(params, compute_dtype=jnp.float32):
    """Pad once into (4*STRIPE, LANE) weight slab + (8, LANE) f32 bias slab."""
    w1, b1, w2, b2, w3, b3, wo, bo = params

    def w_stripe(w):
        r, c = w.shape
        return jnp.pad(w, ((0, STRIPE - r), (0, LANE - c)))

    def b_row(b, fill=0.0):
        b = jnp.asarray(b).reshape(1, -1)
        return jnp.pad(b, ((0, 0), (0, LANE - b.shape[1])), constant_values=fill)

    w_slab = jnp.concatenate(
        [w_stripe(w1), w_stripe(w2), w_stripe(w3), w_stripe(wo)], axis=0
    ).astype(compute_dtype)
    b_slab = jnp.concatenate(
        [b_row(b1), b_row(b2), b_row(b3), b_row(bo, fill=NEG_BIG),
         jnp.zeros((4, LANE), jnp.float32)], axis=0
    ).astype(jnp.float32)   # biases stay f32: added post f32 accumulation; NEG_BIG trick needs f32
    return w_slab, b_slab


def mlp_pallas(x, prepared, *, tile_b=None, out_width=None):
    w_slab, b_slab = prepared
    B, Din = x.shape
    assert Din == INPUT_DIM
    cdt = w_slab.dtype
    x = x.astype(cdt)

    if tile_b is None:
        tile_b, B_pad = _choose_tiling(B)
    else:
        assert tile_b % 16 == 0, "tile_b must be 16-row aligned"
        B_pad = _round_up(B, tile_b)

    if B_pad != B:
        x = jnp.pad(x, ((0, B_pad - B), (0, 0)))   # padded rows: garbage, never sliced out

    if out_width is None:
        out_width = LANE if B_pad <= LANE_DENSE_MAX_B else OUT_PAD

    grid = (B_pad // tile_b,)
    itemsize = jnp.dtype(cdt).itemsize

    cost = pl.CostEstimate(
        flops=2 * B_pad * (INPUT_DIM * HIDDEN_DIM
                           + N_HIDDEN_LAYERS * HIDDEN_DIM * HIDDEN_DIM
                           + HIDDEN_DIM * OUTPUT_DIM),
        transcendentals=B_pad * LANE,                      # softmax exp over all 128 lanes
        bytes_accessed=(B_pad * INPUT_DIM * itemsize       # x read
                        + w_slab.size * itemsize + b_slab.size * 4   # param slabs
                        + B_pad * out_width * 4),          # output write
    )

    out_padded = pl.pallas_call(
        mlp_kernel,
        out_shape=jax.ShapeDtypeStruct((B_pad, out_width), jnp.float32),
        grid_spec=pltpu.PrefetchScalarGridSpec(
            num_scalar_prefetch=0,
            grid=grid,
            in_specs=[
                pl.BlockSpec((tile_b, INPUT_DIM), lambda i: (i, 0)),   # x tile
                pl.BlockSpec(w_slab.shape, lambda i: (0, 0)),          # grid-invariant weights
                pl.BlockSpec(b_slab.shape, lambda i: (0, 0)),          # grid-invariant biases
            ],
            out_specs=pl.BlockSpec((tile_b, out_width), lambda i: (i, 0)),
        ),
        compiler_params=pltpu.CompilerParams(
            dimension_semantics=("parallel",)),   # megacore-shards batch steps on 2-TC chips
        cost_estimate=cost,
    )(x, w_slab, b_slab)

    return out_padded[:B, :OUTPUT_DIM]


def init_params(key):
    """Deterministic init mimicking torch.nn.Linear (uniform(-1/sqrt(fan_in), +))."""
    def linear(key, fan_in, fan_out):
        kw, kb = jax.random.split(key)
        bound = 1.0 / jnp.sqrt(fan_in)
        # stored pre-transposed: (in, out) so the kernel computes y = x @ W + b
        w = jax.random.uniform(kw, (fan_in, fan_out), jnp.float32, -bound, bound)
        b = jax.random.uniform(kb, (1, fan_out), jnp.float32, -bound, bound)
        return w, b

    k1, k2, k3, k4 = jax.random.split(key, 4)
    w1, b1 = linear(k1, INPUT_DIM, HIDDEN_DIM)
    w2, b2 = linear(k2, HIDDEN_DIM, HIDDEN_DIM)
    w3, b3 = linear(k3, HIDDEN_DIM, HIDDEN_DIM)
    wo, bo = linear(k4, HIDDEN_DIM, OUTPUT_DIM)
    return (w1, b1, w2, b2, w3, b3, wo, bo)


def mlp_ref(x, params):
    w1, b1, w2, b2, w3, b3, wo, bo = params
    h = jax.nn.relu(x @ w1 + b1)
    h = jax.nn.relu(h @ w2 + b2)
    h = jax.nn.relu(h @ w3 + b3)
    return jax.nn.softmax(h @ wo + bo, axis=-1)


if __name__ == "__main__":
    key = jax.random.PRNGKey(0)
    kx, kx2, kp = jax.random.split(key, 3)
    params = init_params(kp)

    # --- small batch: f32 path, lane-dense output, single grid step -----------------
    B = 8
    x = jax.random.normal(kx, (B, INPUT_DIM), jnp.float32)
    prepared_f32 = prepare_params(params, jnp.float32)
    out = jax.jit(lambda xx: mlp_pallas(xx, prepared_f32))(x)
    out = jax.block_until_ready(out)
    ref = mlp_ref(x, params)
    assert out.shape == (B, OUTPUT_DIM)
    assert jnp.allclose(out, ref, atol=1e-5, rtol=1e-5), "f32 mismatch vs JAX reference"
    assert jnp.allclose(jnp.sum(out, axis=-1), 1.0, atol=1e-5), "softmax rows must sum to 1"

    # --- ragged larger batch: bf16 operands, padded batch, even multi-step grid,
    #     narrow (B,8) output ----------------------------------------------------------
    B2 = 300
    x2 = jax.random.normal(kx2, (B2, INPUT_DIM), jnp.float32)
    prepared_bf16 = prepare_params(params, jnp.bfloat16)
    out2 = jax.jit(lambda xx: mlp_pallas(xx, prepared_bf16))(x2)
    out2 = jax.block_until_ready(out2)
    ref2 = mlp_ref(x2, params)
    assert out2.shape == (B2, OUTPUT_DIM)
    assert jnp.allclose(out2, ref2, atol=3e-2), "bf16 mismatch vs JAX reference"
    assert jnp.allclose(jnp.sum(out2, axis=-1), 1.0, atol=1e-3), "softmax rows must sum to 1"

    print("KERNEL_OK")
</pallas_src>

<mosaic_0001>
module attributes {stable_mosaic.version = 11 : i64} {
  func.func @mlp_kernel(%arg0: i32, %arg1: memref<16x23xf32, #tpu.memory_space<vmem>>, %arg2: memref<512x128xf32, #tpu.memory_space<vmem>>, %arg3: memref<8x128xf32, #tpu.memory_space<vmem>>, %arg4: memref<16x128xf32, #tpu.memory_space<vmem>>) attributes {dimension_semantics = [#tpu.dimension_semantics<parallel>], iteration_bounds = array<i64: 1>, scalar_prefetch = 0 : i64, scratch_operands = 0 : i64, tpu.core_type = #tpu.core_type<tc>, window_params = [{transform_indices = @transform_0, window_bounds = array<i64: 16, 23>}, {pipeline_mode = #tpu.pipeline_mode<synchronous>, transform_indices = @transform_1, window_bounds = array<i64: 512, 128>}, {pipeline_mode = #tpu.pipeline_mode<synchronous>, transform_indices = @transform_2, window_bounds = array<i64: 8, 128>}, {transform_indices = @transform_3, window_bounds = array<i64: 16, 128>}]} {
    %c0 = arith.constant 0 : index
    %c0_0 = arith.constant 0 : index
    %0 = vector.load %arg1[%c0, %c0_0] : memref<16x23xf32, #tpu.memory_space<vmem>>, vector<16x23xf32>
    %c0_1 = arith.constant 0 : index
    %c0_2 = arith.constant 0 : index
    %1 = vector.load %arg2[%c0_1, %c0_2] : memref<512x128xf32, #tpu.memory_space<vmem>>, vector<23x128xf32>
    %c128 = arith.constant 128 : index
    %c0_3 = arith.constant 0 : index
    %2 = vector.load %arg2[%c128, %c0_3] : memref<512x128xf32, #tpu.memory_space<vmem>>, vector<128x128xf32>
    %c256 = arith.constant 256 : index
    %c0_4 = arith.constant 0 : index
    %3 = vector.load %arg2[%c256, %c0_4] : memref<512x128xf32, #tpu.memory_space<vmem>>, vector<128x128xf32>
    %c384 = arith.constant 384 : index
    %c0_5 = arith.constant 0 : index
    %4 = vector.load %arg2[%c384, %c0_5] : memref<512x128xf32, #tpu.memory_space<vmem>>, vector<128x128xf32>
    %c0_6 = arith.constant 0 : index
    %c0_7 = arith.constant 0 : index
    %5 = vector.load %arg3[%c0_6, %c0_7] : memref<8x128xf32, #tpu.memory_space<vmem>>, vector<1x128xf32>
    %c1 = arith.constant 1 : index
    %c0_8 = arith.constant 0 : index
    %6 = vector.load %arg3[%c1, %c0_8] : memref<8x128xf32, #tpu.memory_space<vmem>>, vector<1x128xf32>
    %c2 = arith.constant 2 : index
    %c0_9 = arith.constant 0 : index
    %7 = vector.load %arg3[%c2, %c0_9] : memref<8x128xf32, #tpu.memory_space<vmem>>, vector<1x128xf32>
    %c3 = arith.constant 3 : index
    %c0_10 = arith.constant 0 : index
    %8 = vector.load %arg3[%c3, %c0_10] : memref<8x128xf32, #tpu.memory_space<vmem>>, vector<1x128xf32>
    %cst = arith.constant dense<0.000000e+00> : vector<16x128xf32>
    %9 = tpu.matmul %0, %1, %cst {dimension_numbers = #tpu.dot_dimension_numbers<[1], [0], [0], [1], [0, 0, 1, 1], [], []>} : vector<16x23xf32>, vector<23x128xf32>, vector<16x128xf32> -> vector<16x128xf32>
    %10 = vector.broadcast %5 : vector<1x128xf32> to vector<16x128xf32>
    %11 = arith.addf %9, %10 : vector<16x128xf32>
    %cst_11 = arith.constant 0.000000e+00 : f32
    %12 = vector.broadcast %cst_11 : f32 to vector<16x128xf32>
    %13 = arith.maximumf %11, %12 : vector<16x128xf32>
    %cst_12 = arith.constant dense<0.000000e+00> : vector<16x128xf32>
    %14 = tpu.matmul %13, %2, %cst_12 {dimension_numbers = #tpu.dot_dimension_numbers<[1], [0], [0], [1], [0, 0, 1, 1], [], []>} : vector<16x128xf32>, vector<128x128xf32>, vector<16x128xf32> -> vector<16x128xf32>
    %15 = vector.broadcast %6 : vector<1x128xf32> to vector<16x128xf32>
    %16 = arith.addf %14, %15 : vector<16x128xf32>
    %cst_13 = arith.constant 0.000000e+00 : f32
    %17 = vector.broadcast %cst_13 : f32 to vector<16x128xf32>
    %18 = arith.maximumf %16, %17 : vector<16x128xf32>
    %cst_14 = arith.constant dense<0.000000e+00> : vector<16x128xf32>
    %19 = tpu.matmul %18, %3, %cst_14 {dimension_numbers = #tpu.dot_dimension_numbers<[1], [0], [0], [1], [0, 0, 1, 1], [], []>} : vector<16x128xf32>, vector<128x128xf32>, vector<16x128xf32> -> vector<16x128xf32>
    %20 = vector.broadcast %7 : vector<1x128xf32> to vector<16x128xf32>
    %21 = arith.addf %19, %20 : vector<16x128xf32>
    %cst_15 = arith.constant 0.000000e+00 : f32
    %22 = vector.broadcast %cst_15 : f32 to vector<16x128xf32>
    %23 = arith.maximumf %21, %22 : vector<16x128xf32>
    %cst_16 = arith.constant dense<0.000000e+00> : vector<16x128xf32>
    %24 = tpu.matmul %23, %4, %cst_16 {dimension_numbers = #tpu.dot_dimension_numbers<[1], [0], [0], [1], [0, 0, 1, 1], [], []>} : vector<16x128xf32>, vector<128x128xf32>, vector<16x128xf32> -> vector<16x128xf32>
    %25 = vector.broadcast %8 : vector<1x128xf32> to vector<16x128xf32>
    %26 = arith.addf %24, %25 : vector<16x128xf32>
    %cst_17 = arith.constant dense<0xFF800000> : vector<16xf32>
    %27 = vector.multi_reduction <maximumf>, %26, %cst_17 [1] : vector<16x128xf32> to vector<16xf32>
    %28 = vector.shape_cast %27 : vector<16xf32> to vector<16x1xf32>
    %29 = vector.broadcast %28 : vector<16x1xf32> to vector<16x128xf32>
    %30 = arith.subf %26, %29 : vector<16x128xf32>
    %31 = math.exp %30 : vector<16x128xf32>
    %cst_18 = arith.constant dense<0.000000e+00> : vector<16xf32>
    %32 = vector.multi_reduction <add>, %31, %cst_18 [1] : vector<16x128xf32> to vector<16xf32>
    %33 = vector.shape_cast %32 : vector<16xf32> to vector<16x1xf32>
    %34 = tpu.reciprocal %33 : vector<16x1xf32> -> vector<16x1xf32>
    %35 = vector.broadcast %34 : vector<16x1xf32> to vector<16x128xf32>
    %36 = arith.mulf %31, %35 : vector<16x128xf32>
    %c0_19 = arith.constant 0 : index
    %c0_20 = arith.constant 0 : index
    %37 = vector.load %arg4[%c0_19, %c0_20] : memref<16x128xf32, #tpu.memory_space<vmem>>, vector<16x128xf32>
    tpu.vector_store %arg4[%c0_19, %c0_20], %36 {strides = array<i32>} : memref<16x128xf32, #tpu.memory_space<vmem>>, vector<16x128xf32>,
    return
  }
  func.func @transform_0(%arg0: i32) -> (i32, i32) {
    %c0_i32 = arith.constant 0 : i32
    %c0_i32_0 = arith.constant 0 : i32
    return %arg0, %c0_i32 : i32, i32
  }
  func.func @transform_1(%arg0: i32) -> (i32, i32) {
    %c0_i32 = arith.constant 0 : i32
    %c0_i32_0 = arith.constant 0 : i32
    %c0_i32_1 = arith.constant 0 : i32
    return %c0_i32, %c0_i32_0 : i32, i32
  }
  func.func @transform_2(%arg0: i32) -> (i32, i32) {
    %c0_i32 = arith.constant 0 : i32
    %c0_i32_0 = arith.constant 0 : i32
    %c0_i32_1 = arith.constant 0 : i32
    return %c0_i32, %c0_i32_0 : i32, i32
  }
  func.func @transform_3(%arg0: i32) -> (i32, i32) {
    %c0_i32 = arith.constant 0 : i32
    %c0_i32_0 = arith.constant 0 : i32
    return %arg0, %c0_i32 : i32, i32
  }
}

</mosaic_0001>

<llo_original>
// kernel: _lambda_.1
$region0: #{_lambda_.1}
  #allocation0 [shape = 'u32[]', space=smem, size = 0x4, offset = 0x4, fixed_abs, tag = 'smem constant byte address 0x4 - core index']
  #allocation1 [shape = 'u32[144,128]{1,0:T(1,128)}', space=vmem, size = 0x12000, scoped, tag = 'internal scratch']
  %s0 = inlined_call_operand.vmem [shape: f32[16,23], index: 0, kind: input, shape index: {}]
  %s1 = inlined_call_operand.hbm [shape: f32[512,128], index: 1, kind: input, shape index: {}]
  %s2 = inlined_call_operand.vmem [shape: f32[8,128], index: 2, kind: input, shape index: {}]
  %s3 = inlined_call_operand.vmem [shape: f32[16,128], index: 3, kind: output, shape index: {}]
  %s4 = sld [smem:[#allocation0]]
  $region26: #{_lambda_.1} parent=0
    _
  %s6 = ssub.s32 1, %s4
  %s7 = scalar_select 0, %s6, %s4
  $region1: #{_lambda_.1} parent=0
    #allocation2 [shape = 'u8[262144]{0}', space=vmem, size = 0x40000, scoped, tag = 'input window, operand 1, single buffered']
    #allocation3 [shape = 's32[1]{0}', space=sflag, size = 0x4, scoped, tag = 'scoped memory for _lambda_.1']
    %8 = vsyncpa [#allocation3], 0
    // Predicated region
    $region2: #{_lambda_.1} parent=1 // pred_check
      _
    $region3: #{_lambda_.1} parent=1 // pred_check_branch
      %10 = sbr.rel (0) target = $region5
    $region4: #{_lambda_.1} parent=1 // pred_region
      _
    $region5: #{_lambda_.1} parent=1 // pred_fallthru
      _
    // Predicated region
    $region6: #{_lambda_.1} parent=1 // pred_check
      _
    $region7: #{_lambda_.1} parent=1 // pred_check_branch
      %12 = sbr.rel (0) target = $region9
    $region8: #{_lambda_.1} parent=1 // pred_region
      %s14 = ssub.s32 8192, 8192
      %15 = vsyncadd [#allocation3], %s14
      %s16 = sshll.u32 [#allocation2], 4
      %s17 = int_to_ptr.vmem [resolvable:$true] %s16
      %22 = dma.hbm_to_vmem [thread:$0]  %s1, 8192, %s17, [#allocation3], 128, 128, 8
    $region9: #{_lambda_.1} parent=1 // pred_fallthru
      _
    // Predicated region
    $region10: #{_lambda_.1} parent=1 // pred_check
      _
    $region11: #{_lambda_.1} parent=1 // pred_check_branch
      %24 = sbr.rel (0) target = $region13
    $region12: #{_lambda_.1} parent=1 // pred_region
      _
    $region13: #{_lambda_.1} parent=1 // pred_fallthru
      _
    // Predicated region
    $region14: #{_lambda_.1} parent=1 // pred_check
      _
    $region15: #{_lambda_.1} parent=1 // pred_check_branch
      %26 = sbr.rel (0) target = $region17
    $region16: #{_lambda_.1} parent=1 // pred_region
      %27 = dma.done [#allocation3], 8192
    $region17: #{_lambda_.1} parent=1 // pred_fallthru
      _
    %v28 = vld [vmem:[%s0] sm:$0xff]
    %v29 = vld [vmem:[%s0 + $0x8] sm:$0xff]
    %v30 = vld [vmem:[#allocation2] sm:$0xff]
    %v31 = vld [vmem:[#allocation2 + $0x8] sm:$0xff]
    %v32 = vld [vmem:[#allocation2 + $0x10] sm:$0x7f]
    %v33 = vld [vmem:[#allocation2 + $0x80] sm:$0xff]
    %v34 = vld [vmem:[#allocation2 + $0x88] sm:$0xff]
    %v35 = vld [vmem:[#allocation2 + $0x90] sm:$0xff]
    %v36 = vld [vmem:[#allocation2 + $0x98] sm:$0xff]
    %v37 = vld [vmem:[#allocation2 + $0xa0] sm:$0xff]
    %v38 = vld [vmem:[#allocation2 + $0xa8] sm:$0xff]
    %v39 = vld [vmem:[#allocation2 + $0xb0] sm:$0xff]
    %v40 = vld [vmem:[#allocation2 + $0xb8] sm:$0xff]
    %v41 = vld [vmem:[#allocation2 + $0xc0] sm:$0xff]
    %v42 = vld [vmem:[#allocation2 + $0xc8] sm:$0xff]
    %v43 = vld [vmem:[#allocation2 + $0xd0] sm:$0xff]
    %v44 = vld [vmem:[#allocation2 + $0xd8] sm:$0xff]
    %v45 = vld [vmem:[#allocation2 + $0xe0] sm:$0xff]
    %v46 = vld [vmem:[#allocation2 + $0xe8] sm:$0xff]
    %v47 = vld [vmem:[#allocation2 + $0xf0] sm:$0xff]
    %v48 = vld [vmem:[#allocation2 + $0xf8] sm:$0xff]
    %v49 = vld [vmem:[#allocation2 + $0x100] sm:$0xff]
    %v50 = vld [vmem:[#allocation2 + $0x108] sm:$0xff]
    %v51 = vld [vmem:[#allocation2 + $0x110] sm:$0xff]
    %v52 = vld [vmem:[#allocation2 + $0x118] sm:$0xff]
    %v53 = vld [vmem:[#allocation2 + $0x120] sm:$0xff]
    %v54 = vld [vmem:[#allocation2 + $0x128] sm:$0xff]
    %v55 = vld [vmem:[#allocation2 + $0x130] sm:$0xff]
    %v56 = vld [vmem:[#allocation2 + $0x138] sm:$0xff]
    %v57 = vld [vmem:[#allocation2 + $0x140] sm:$0xff]
    %v58 = vld [vmem:[#allocation2 + $0x148] sm:$0xff]
    %v59 = vld [vmem:[#allocation2 + $0x150] sm:$0xff]
    %v60 = vld [vmem:[#allocation2 + $0x158] sm:$0xff]
    %v61 = vld [vmem:[#allocation2 + $0x160] sm:$0xff]
    %v62 = vld [vmem:[#allocation2 + $0x168] sm:$0xff]
    %v63 = vld [vmem:[#allocation2 + $0x170] sm:$0xff]
    %v64 = vld [vmem:[#allocation2 + $0x178] sm:$0xff]
    %v65 = vld [vmem:[#allocation2 + $0x180] sm:$0xff]
    %v66 = vld [vmem:[#allocation2 + $0x188] sm:$0xff]
    %v67 = vld [vmem:[#allocation2 + $0x190] sm:$0xff]
    %v68 = vld [vmem:[#allocation2 + $0x198] sm:$0xff]
    %v69 = vld [vmem:[#allocation2 + $0x1a0] sm:$0xff]
    %v70 = vld [vmem:[#allocation2 + $0x1a8] sm:$0xff]
    %v71 = vld [vmem:[#allocation2 + $0x1b0] sm:$0xff]
    %v72 = vld [vmem:[#allocation2 + $0x1b8] sm:$0xff]
    %v73 = vld [vmem:[#allocation2 + $0x1c0] sm:$0xff]
    %v74 = vld [vmem:[#allocation2 + $0x1c8] sm:$0xff]
    %v75 = vld [vmem:[#allocation2 + $0x1d0] sm:$0xff]
    %v76 = vld [vmem:[#allocation2 + $0x1d8] sm:$0xff]
    %v77 = vld [vmem:[#allocation2 + $0x1e0] sm:$0xff]
    %v78 = vld [vmem:[#allocation2 + $0x1e8] sm:$0xff]
    %v79 = vld [vmem:[#allocation2 + $0x1f0] sm:$0xff]
    %v80 = vld [vmem:[#allocation2 + $0x1f8] sm:$0xff]
    %v81 = vld [vmem:[%s2] sm:$0x1]
    %v82 = vld [vmem:[%s2 + $0x1] sm:$0x1]
    %v83 = vld [vmem:[%s2 + $0x2] sm:$0x1]
    %v84 = vld [vmem:[%s2 + $0x3] sm:$0x1]
    %v85 = vlaneseq
    %v86 = vshrl.u32 %v85, 7
    %v87 = vsub.s32 0, %v86
    %v88 = vrot.slane %v81, %v87
    %vm89 = vcmask 187392
    %v91 = vsel %vm89, %v28, 0
    %v94 = vsel %vm89, %v29, 0
    %vm96 = vcmask 1046528
    %v98 = vsel %vm96, %v32, 0
    %100 = vmatprep.subr.mxu0 0.0
    %101 = vmatpush1.msra.mxu0 0.0
    %102 = vmatprep.subr.mxu0 0.0
    %103 = vmatpush1.msra.mxu0 0.0
    %104 = vmatprep.subr.mxu0 0.0
    %105 = vmatpush1.msra.mxu0 0.0
    %106 = vmatprep.subr.mxu0 0.0
    %107 = vmatpush1.msra.mxu0 0.0
    %108 = vmatprep.subr.mxu0 0.0
    %109 = vmatpush1.msra.mxu0 0.0
    %110 = vmatprep.subr.mxu0 0.0
    %111 = vmatpush1.msra.mxu0 0.0
    %112 = vmatprep.subr.mxu0 0.0
    %113 = vmatpush1.msra.mxu0 0.0
    %114 = vmatprep.subr.mxu0 0.0
    %115 = vmatpush1.msra.mxu0 0.0
    %116 = vmatprep.subr.mxu0 0.0
    %117 = vmatpush1.msra.mxu0 0.0
    %118 = vmatprep.subr.mxu0 0.0
    %119 = vmatpush1.msra.mxu0 0.0
    %120 = vmatprep.subr.mxu0 0.0
    %121 = vmatpush1.msra.mxu0 0.0
    %122 = vmatprep.subr.mxu0 0.0
    %123 = vmatpush1.msra.mxu0 0.0
    %124 = vmatprep.subr.mxu0 0.0
    %125 = vmatpush1.msra.mxu0 0.0
    %126 = vmatprep.subr.mxu0 0.0
    %127 = vmatpush1.msra.mxu0 %v98
    %128 = vmatprep.subr.mxu0 0.0
    %129 = vmatpush1.msra.mxu0 %v31
    %130 = vmatprep.subr.mxu0 0.0
    %131 = vmatpush1.msra.mxu0 %v30
    %132 = vmatprep.subr.mxu0 0.0
    %133 = vmatpush2.msra.mxu0 0.0
    %134 = vmatprep.subr.mxu0 0.0
    %135 = vmatpush2.msra.mxu0 0.0
    %136 = vmatprep.subr.mxu0 0.0
    %137 = vmatpush2.msra.mxu0 0.0
    %138 = vmatprep.subr.mxu0 0.0
    %139 = vmatpush2.msra.mxu0 0.0
    %140 = vmatprep.subr.mxu0 0.0
    %141 = vmatpush2.msra.mxu0 0.0
    %142 = vmatprep.subr.mxu0 0.0
    %143 = vmatpush2.msra.mxu0 0.0
    %144 = vmatprep.subr.mxu0 0.0
    %145 = vmatpush2.msra.mxu0 0.0
    %146 = vmatprep.subr.mxu0 0.0
    %147 = vmatpush2.msra.mxu0 0.0
    %148 = vmatprep.subr.mxu0 0.0
    %149 = vmatpush2.msra.mxu0 0.0
    %150 = vmatprep.subr.mxu0 0.0
    %151 = vmatpush2.msra.mxu0 0.0
    %152 = vmatprep.subr.mxu0 0.0
    %153 = vmatpush2.msra.mxu0 0.0
    %154 = vmatprep.subr.mxu0 0.0
    %155 = vmatpush2.msra.mxu0 0.0
    %156 = vmatprep.subr.mxu0 0.0
    %157 = vmatpush2.msra.mxu0 0.0
    %158 = vmatprep.subr.mxu0 0.0
    %159 = vmatpush2.msra.mxu0 0.0
    %160 = vmatprep.subr.mxu0 0.0
    %161 = vmatpush2.msra.mxu0 0.0
    %162 = vmatprep.subr.mxu0 0.0
    %163 = vmatpush2.msra.mxu0 0.0
    %164 = vmatprep.mubr.f32.mxu0 0.0
    %165 = vmatmul.mubr.f32.gmra.mxu0 %v91
    %v166 = vpop.f32.mrf.mxu0
    %v167 = vadd.f32 %v88, %v166
    %v168 = vpop.f32.mrf.mxu0
    %169 = vmatprep.mubr.f32.mxu0 0.0
    %170 = vmatmul.mubr.f32.gmra.mxu0 %v94
    %v171 = vpop.f32.mrf.mxu0
    %v172 = vadd.f32 %v88, %v171
    %v173 = vpop.f32.mrf.mxu0
    %174 = vdwg.mxu0
    %v175 = vmax.f32 %v167, 0.0
    %v176 = vmax.f32 %v172, 0.0
    %v177 = vlaneseq
    %v178 = vshrl.u32 %v177, 7
    %v179 = vsub.s32 0, %v178
    %v180 = vrot.slane %v82, %v179
    %181 = vmatprep.subr.mxu0 0.0
    %182 = vmatpush1.msra.mxu0 %v48
    %183 = vmatprep.subr.mxu0 0.0
    %184 = vmatpush1.msra.mxu0 %v47
    %185 = vmatprep.subr.mxu0 0.0
    %186 = vmatpush1.msra.mxu0 %v46
    %187 = vmatprep.subr.mxu0 0.0
    %188 = vmatpush1.msra.mxu0 %v45
    %189 = vmatprep.subr.mxu0 0.0
    %190 = vmatpush1.msra.mxu0 %v44
    %191 = vmatprep.subr.mxu0 0.0
    %192 = vmatpush1.msra.mxu0 %v43
    %193 = vmatprep.subr.mxu0 0.0
    %194 = vmatpush1.msra.mxu0 %v42
    %195 = vmatprep.subr.mxu0 0.0
    %196 = vmatpush1.msra.mxu0 %v41
    %197 = vmatprep.subr.mxu0 0.0
    %198 = vmatpush1.msra.mxu0 %v40
    %199 = vmatprep.subr.mxu0 0.0
    %200 = vmatpush1.msra.mxu0 %v39
    %201 = vmatprep.subr.mxu0 0.0
    %202 = vmatpush1.msra.mxu0 %v38
    %203 = vmatprep.subr.mxu0 0.0
    %204 = vmatpush1.msra.mxu0 %v37
    %205 = vmatprep.subr.mxu0 0.0
    %206 = vmatpush1.msra.mxu0 %v36
    %207 = vmatprep.subr.mxu0 0.0
    %208 = vmatpush1.msra.mxu0 %v35
    %209 = vmatprep.subr.mxu0 0.0
    %210 = vmatpush1.msra.mxu0 %v34
    %211 = vmatprep.subr.mxu0 0.0
    %212 = vmatpush1.msra.mxu0 %v33
    %213 = vmatprep.subr.mxu0 0.0
    %214 = vmatpush2.msra.mxu0 0.0
    %215 = vmatprep.subr.mxu0 0.0
    %216 = vmatpush2.msra.mxu0 0.0
    %217 = vmatprep.subr.mxu0 0.0
    %218 = vmatpush2.msra.mxu0 0.0
    %219 = vmatprep.subr.mxu0 0.0
    %220 = vmatpush2.msra.mxu0 0.0
    %221 = vmatprep.subr.mxu0 0.0
    %222 = vmatpush2.msra.mxu0 0.0
    %223 = vmatprep.subr.mxu0 0.0
    %224 = vmatpush2.msra.mxu0 0.0
    %225 = vmatprep.subr.mxu0 0.0
    %226 = vmatpush2.msra.mxu0 0.0
    %227 = vmatprep.subr.mxu0 0.0
    %228 = vmatpush2.msra.mxu0 0.0
    %229 = vmatprep.subr.mxu0 0.0
    %230 = vmatpush2.msra.mxu0 0.0
    %231 = vmatprep.subr.mxu0 0.0
    %232 = vmatpush2.msra.mxu0 0.0
    %233 = vmatprep.subr.mxu0 0.0
    %234 = vmatpush2.msra.mxu0 0.0
    %235 = vmatprep.subr.mxu0 0.0
    %236 = vmatpush2.msra.mxu0 0.0
    %237 = vmatprep.subr.mxu0 0.0
    %238 = vmatpush2.msra.mxu0 0.0
    %239 = vmatprep.subr.mxu0 0.0
    %240 = vmatpush2.msra.mxu0 0.0
    %241 = vmatprep.subr.mxu0 0.0
    %242 = vmatpush2.msra.mxu0 0.0
    %243 = vmatprep.subr.mxu0 0.0
    %244 = vmatpush2.msra.mxu0 0.0
    %245 = vmatprep.mubr.f32.mxu0 0.0
    %246 = vmatmul.mubr.f32.gmra.mxu0 %v175
    %v247 = vpop.f32.mrf.mxu0
    %v248 = vadd.f32 %v180, %v247
    %v249 = vpop.f32.mrf.mxu0
    %250 = vmatprep.mubr.f32.mxu0 0.0
    %251 = vmatmul.mubr.f32.gmra.mxu0 %v176
    %v252 = vpop.f32.mrf.mxu0
    %v253 = vadd.f32 %v180, %v252
    %v254 = vpop.f32.mrf.mxu0
    %255 = vdwg.mxu0
    %v256 = vmax.f32 %v248, 0.0
    %v257 = vmax.f32 %v253, 0.0
    %v258 = vlaneseq
    %v259 = vshrl.u32 %v258, 7
    %v260 = vsub.s32 0, %v259
    %v261 = vrot.slane %v83, %v260
    %262 = vmatprep.subr.mxu0 0.0
    %263 = vmatpush1.msra.mxu0 %v64
    %264 = vmatprep.subr.mxu0 0.0
    %265 = vmatpush1.msra.mxu0 %v63
    %266 = vmatprep.subr.mxu0 0.0
    %267 = vmatpush1.msra.mxu0 %v62
    %268 = vmatprep.subr.mxu0 0.0
    %269 = vmatpush1.msra.mxu0 %v61
    %270 = vmatprep.subr.mxu0 0.0
    %271 = vmatpush1.msra.mxu0 %v60
    %272 = vmatprep.subr.mxu0 0.0
    %273 = vmatpush1.msra.mxu0 %v59
    %274 = vmatprep.subr.mxu0 0.0
    %275 = vmatpush1.msra.mxu0 %v58
    %276 = vmatprep.subr.mxu0 0.0
    %277 = vmatpush1.msra.mxu0 %v57
    %278 = vmatprep.subr.mxu0 0.0
    %279 = vmatpush1.msra.mxu0 %v56
    %280 = vmatprep.subr.mxu0 0.0
    %281 = vmatpush1.msra.mxu0 %v55
    %282 = vmatprep.subr.mxu0 0.0
    %283 = vmatpush1.msra.mxu0 %v54
    %284 = vmatprep.subr.mxu0 0.0
    %285 = vmatpush1.msra.mxu0 %v53
    %286 = vmatprep.subr.mxu0 0.0
    %287 = vmatpush1.msra.mxu0 %v52
    %288 = vmatprep.subr.mxu0 0.0
    %289 = vmatpush1.msra.mxu0 %v51
    %290 = vmatprep.subr.mxu0 0.0
    %291 = vmatpush1.msra.mxu0 %v50
    %292 = vmatprep.subr.mxu0 0.0
    %293 = vmatpush1.msra.mxu0 %v49
    %294 = vmatprep.subr.mxu0 0.0
    %295 = vmatpush2.msra.mxu0 0.0
    %296 = vmatprep.subr.mxu0 0.0
    %297 = vmatpush2.msra.mxu0 0.0
    %298 = vmatprep.subr.mxu0 0.0
    %299 = vmatpush2.msra.mxu0 0.0
    %300 = vmatprep.subr.mxu0 0.0
    %301 = vmatpush2.msra.mxu0 0.0
    %302 = vmatprep.subr.mxu0 0.0
    %303 = vmatpush2.msra.mxu0 0.0
    %304 = vmatprep.subr.mxu0 0.0
    %305 = vmatpush2.msra.mxu0 0.0
    %306 = vmatprep.subr.mxu0 0.0
    %307 = vmatpush2.msra.mxu0 0.0
    %308 = vmatprep.subr.mxu0 0.0
    %309 = vmatpush2.msra.mxu0 0.0
    %310 = vmatprep.subr.mxu0 0.0
    %311 = vmatpush2.msra.mxu0 0.0
    %312 = vmatprep.subr.mxu0 0.0
    %313 = vmatpush2.msra.mxu0 0.0
    %314 = vmatprep.subr.mxu0 0.0
    %315 = vmatpush2.msra.mxu0 0.0
    %316 = vmatprep.subr.mxu0 0.0
    %317 = vmatpush2.msra.mxu0 0.0
    %318 = vmatprep.subr.mxu0 0.0
    %319 = vmatpush2.msra.mxu0 0.0
    %320 = vmatprep.subr.mxu0 0.0
    %321 = vmatpush2.msra.mxu0 0.0
    %322 = vmatprep.subr.mxu0 0.0
    %323 = vmatpush2.msra.mxu0 0.0
    %324 = vmatprep.subr.mxu0 0.0
    %325 = vmatpush2.msra.mxu0 0.0
    %326 = vmatprep.mubr.f32.mxu0 0.0
    %327 = vmatmul.mubr.f32.gmra.mxu0 %v256
    %v328 = vpop.f32.mrf.mxu0
    %v329 = vadd.f32 %v261, %v328
    %v330 = vpop.f32.mrf.mxu0
    %331 = vmatprep.mubr.f32.mxu0 0.0
    %332 = vmatmul.mubr.f32.gmra.mxu0 %v257
    %v333 = vpop.f32.mrf.mxu0
    %v334 = vadd.f32 %v261, %v333
    %v335 = vpop.f32.mrf.mxu0
    %336 = vdwg.mxu0
    %v337 = vmax.f32 %v329, 0.0
    %v338 = vmax.f32 %v334, 0.0
    %v339 = vlaneseq
    %v340 = vshrl.u32 %v339, 7
    %v341 = vsub.s32 0, %v340
    %v342 = vrot.slane %v84, %v341
    %343 = vmatprep.subr.mxu0 0.0
    %344 = vmatpush1.msra.mxu0 %v80
    %345 = vmatprep.subr.mxu0 0.0
    %346 = vmatpush1.msra.mxu0 %v79
    %347 = vmatprep.subr.mxu0 0.0
    %348 = vmatpush1.msra.mxu0 %v78
    %349 = vmatprep.subr.mxu0 0.0
    %350 = vmatpush1.msra.mxu0 %v77
    %351 = vmatprep.subr.mxu0 0.0
    %352 = vmatpush1.msra.mxu0 %v76
    %353 = vmatprep.subr.mxu0 0.0
    %354 = vmatpush1.msra.mxu0 %v75
    %355 = vmatprep.subr.mxu0 0.0
    %356 = vmatpush1.msra.mxu0 %v74
    %357 = vmatprep.subr.mxu0 0.0
    %358 = vmatpush1.msra.mxu0 %v73
    %359 = vmatprep.subr.mxu0 0.0
    %360 = vmatpush1.msra.mxu0 %v72
    %361 = vmatprep.subr.mxu0 0.0
    %362 = vmatpush1.msra.mxu0 %v71
    %363 = vmatprep.subr.mxu0 0.0
    %364 = vmatpush1.msra.mxu0 %v70
    %365 = vmatprep.subr.mxu0 0.0
    %366 = vmatpush1.msra.mxu0 %v69
    %367 = vmatprep.subr.mxu0 0.0
    %368 = vmatpush1.msra.mxu0 %v68
    %369 = vmatprep.subr.mxu0 0.0
    %370 = vmatpush1.msra.mxu0 %v67
    %371 = vmatprep.subr.mxu0 0.0
    %372 = vmatpush1.msra.mxu0 %v66
    %373 = vmatprep.subr.mxu0 0.0
    %374 = vmatpush1.msra.mxu0 %v65
    %375 = vmatprep.subr.mxu0 0.0
    %376 = vmatpush2.msra.mxu0 0.0
    %377 = vmatprep.subr.mxu0 0.0
    %378 = vmatpush2.msra.mxu0 0.0
    %379 = vmatprep.subr.mxu0 0.0
    %380 = vmatpush2.msra.mxu0 0.0
    %381 = vmatprep.subr.mxu0 0.0
    %382 = vmatpush2.msra.mxu0 0.0
    %383 = vmatprep.subr.mxu0 0.0
    %384 = vmatpush2.msra.mxu0 0.0
    %385 = vmatprep.subr.mxu0 0.0
    %386 = vmatpush2.msra.mxu0 0.0
    %387 = vmatprep.subr.mxu0 0.0
    %388 = vmatpush2.msra.mxu0 0.0
    %389 = vmatprep.subr.mxu0 0.0
    %390 = vmatpush2.msra.mxu0 0.0
    %391 = vmatprep.subr.mxu0 0.0
    %392 = vmatpush2.msra.mxu0 0.0
    %393 = vmatprep.subr.mxu0 0.0
    %394 = vmatpush2.msra.mxu0 0.0
    %395 = vmatprep.subr.mxu0 0.0
    %396 = vmatpush2.msra.mxu0 0.0
    %397 = vmatprep.subr.mxu0 0.0
    %398 = vmatpush2.msra.mxu0 0.0
    %399 = vmatprep.subr.mxu0 0.0
    %400 = vmatpush2.msra.mxu0 0.0
    %401 = vmatprep.subr.mxu0 0.0
    %402 = vmatpush2.msra.mxu0 0.0
    %403 = vmatprep.subr.mxu0 0.0
    %404 = vmatpush2.msra.mxu0 0.0
    %405 = vmatprep.subr.mxu0 0.0
    %406 = vmatpush2.msra.mxu0 0.0
    %407 = vmatprep.mubr.f32.mxu0 0.0
    %408 = vmatmul.mubr.f32.gmra.mxu0 %v337
    %v409 = vpop.f32.mrf.mxu0
    %v410 = vadd.f32 %v342, %v409
    %v411 = vpop.f32.mrf.mxu0
    %412 = vmatprep.mubr.f32.mxu0 0.0
    %413 = vmatmul.mubr.f32.gmra.mxu0 %v338
    %v414 = vpop.f32.mrf.mxu0
    %v415 = vadd.f32 %v342, %v414
    %v416 = vpop.f32.mrf.mxu0
    %417 = vdwg.mxu0
    %418 = vmax.xlane.f32.xlu0 %v410
    %v419 = vpop.xlane.xlu0 %418
    %420 = vmax.xlane.f32.xlu0 %v415
    %v421 = vpop.xlane.xlu0 %420
    %v422 = vsub.f32 %v410, %v419
    %v423 = vsub.f32 %v415, %v421
    %v424 = vmul.f32 %v422, 1.442695
    %v425 = vpow.pop %v424
    %v426 = vmul.f32 %v423, 1.442695
    %v427 = vpow.pop %v426
    %428 = vadd.xlane.f32.xlu0 %v425
    %v429 = vpop.xlane.xlu0 %428
    %430 = vadd.xlane.f32.xlu0 %v427
    %v431 = vpop.xlane.xlu0 %430
    %v432 = vrcp.pop %v429
    %v433 = vrcp.pop %v431
    %v434 = vmul.f32 %v425, %v432
    %v435 = vmul.f32 %v427, %v433
    %436 = vst [vmem:[%s3] sm:$0xff] %v434
    %437 = vst [vmem:[%s3 + $0x8] sm:$0xff] %v435
    // Predicated region
    $region18: #{_lambda_.1} parent=1 // pred_check
      _
    $region19: #{_lambda_.1} parent=1 // pred_check_branch
      %439 = sbr.rel (0) target = $region21
    $region20: #{_lambda_.1} parent=1 // pred_region
      _
    $region21: #{_lambda_.1} parent=1 // pred_fallthru
      _
    // Predicated region
    $region22: #{_lambda_.1} parent=1 // pred_check
      _
    $region23: #{_lambda_.1} parent=1 // pred_check_branch
      %441 = sbr.rel (0) target = $region25
    $region24: #{_lambda_.1} parent=1 // pred_region
      _
    $region25: #{_lambda_.1} parent=1 // pred_fallthru
      _
    %442 = vsyncpa [#allocation3], 1

</llo_original>
